<compile_context>
chip_gen: v6e
topology: v6e:2x2x1
jax: 0.10.0
libtpu: 0.0.40
codegen_flags: <defaults>
</compile_context>

<pallas_src>
import functools

import jax
import jax.numpy as jnp
from jax import lax
from jax.experimental import pallas as pl
from jax.experimental.pallas import tpu as pltpu


def _rmsnorm_kernel(x_ref, s_ref, o_ref, *, eps: float):
    # NOTE: when the last grid block is partial, rows past the true row count
    # contain uninitialized data.  That is safe ONLY because everything below
    # is strictly per-row and Pallas masks the out-of-bounds writeback.  Do
    # not add any cross-row reduction here without re-adding row padding.

    # Pass 1: per-row mean of squares -> rsqrt (f32 accumulation fused with
    # the upcast; the f32 block is dead after the reduction).
    xf = x_ref[...].astype(jnp.float32)                                # (br, dim)
    inv = lax.rsqrt(jnp.mean(xf * xf, axis=-1, keepdims=True) + eps)   # (br, 1)

    # Pass 2: re-read the block, normalize, apply the folded (1 + w) scale.
    scale = s_ref[...]                                                 # (1, dim) f32
    y = x_ref[...].astype(jnp.float32) * inv                           # (br, dim) f32
    o_ref[...] = (y * scale).astype(o_ref.dtype)


def _tpu_caps():
    """Return (vmem_capacity_bytes, num_tensorcores) with conservative fallbacks."""
    vmem_bytes = 64 << 20          # v7x per-TC value: safe lower bound everywhere
    num_cores = 1
    try:
        info = pltpu.get_tpu_info()
        vmem_bytes = int(getattr(info, "vmem_capacity_bytes", vmem_bytes))
        num_cores = int(getattr(info, "num_cores", num_cores))
    except Exception:
        pass
    try:
        num_cores = max(num_cores, int(getattr(jax.devices()[0], "num_cores", 1)))
    except Exception:
        pass
    return vmem_bytes, num_cores


def _sublane_multiple(dtype) -> int:
    # Real sublane packing multiple: 8 for f32, 16 for bf16, 32 for int8/fp8.
    return max(8, 32 // max(1, jnp.dtype(dtype).itemsize))


def _round_up(n: int, m: int) -> int:
    return -(-n // m) * m


def _pick_block_rows(rows: int, dim: int, dtype, vmem_bytes: int, num_cores: int) -> int:
    """Row-block size: byte-budgeted per VMEM generation, sublane-aligned."""
    itemsize = jnp.dtype(dtype).itemsize
    sub = _sublane_multiple(dtype)
    row_bytes = max(1, dim * itemsize)

    # Per-block input byte target (no row cap — bytes only).
    if vmem_bytes >= (100 << 20):       # v5e / v6e: 128 MiB VMEM
        target_bytes = 8 << 20
    else:                               # v7x (64 MiB / TC) or unknown
        target_bytes = 4 << 20

    br = max(sub, (target_bytes // row_bytes) // sub * sub)

    # Only split the grid if there are >= 2 TensorCores sharing the
    # "parallel" axis (v7x).  On single-TC chips the grid is a serial loop
    # and splitting is pure per-step overhead.
    if num_cores >= 2 and rows > num_cores * sub:
        per_core = _round_up(-(-rows // num_cores), sub)
        br = min(br, max(sub, per_core))

    # Never bigger than the rounded-up row count.
    br = min(br, _round_up(rows, sub))
    return max(sub, br)


def _vmem_usage_bytes(block_rows: int, dim: int, itemsize: int) -> int:
    block_bytes = block_rows * dim * itemsize
    return int(2 * block_bytes              # double-buffered input blocks
               + 2 * block_bytes            # double-buffered output blocks
               + block_rows * dim * 4       # one block-sized f32 intermediate
               + 2 * dim * 4                # scale row (double-buffered)
               + (2 << 20))                 # slack


def rms_norm(x, weight, *, eps: float = 1e-6, add_unit_offset: bool = True,
             block_rows: int | None = None):
    """RMSNorm over the last axis of `x`.  Matches the PyTorch reference."""
    orig_shape = x.shape
    dim = orig_shape[-1]
    assert weight.shape == (dim,)

    rows = 1
    for s in orig_shape[:-1]:
        rows *= s
    x2d = x.reshape(rows, dim)

    # Fold the unit offset into an f32 scale once, outside the kernel.
    w32 = weight.astype(jnp.float32)
    scale = (1.0 + w32) if add_unit_offset else w32
    scale2d = scale.reshape(1, dim)

    itemsize = jnp.dtype(x.dtype).itemsize
    sub = _sublane_multiple(x.dtype)
    vmem_bytes, num_cores = _tpu_caps()

    if block_rows is None:
        block_rows = _pick_block_rows(rows, dim, x.dtype, vmem_bytes, num_cores)
    else:
        block_rows = max(sub, _round_up(block_rows, sub))

    # Per-generation VMEM cap: ~100 MiB on 128 MiB parts, ~56 MiB on 64 MiB
    # parts; shrink the block if the (tight) budget would exceed it.
    gen_cap = min(max(vmem_bytes - (8 << 20), 32 << 20), 100 << 20)
    while block_rows > sub and _vmem_usage_bytes(block_rows, dim, itemsize) > gen_cap:
        block_rows = max(sub, (block_rows // 2) // sub * sub)

    vmem_limit = min(max(_vmem_usage_bytes(block_rows, dim, itemsize), 32 << 20),
                     gen_cap)

    grid = (pl.cdiv(rows, block_rows),)

    out2d = pl.pallas_call(
        functools.partial(_rmsnorm_kernel, eps=eps),
        out_shape=jax.ShapeDtypeStruct((rows, dim), x.dtype),
        grid_spec=pltpu.PrefetchScalarGridSpec(
            num_scalar_prefetch=0,
            grid=grid,
            in_specs=[
                pl.BlockSpec((block_rows, dim), lambda i: (i, 0)),
                pl.BlockSpec((1, dim), lambda i: (0, 0)),
            ],
            out_specs=pl.BlockSpec((block_rows, dim), lambda i: (i, 0)),
        ),
        compiler_params=pltpu.CompilerParams(
            dimension_semantics=("parallel",),
            vmem_limit_bytes=vmem_limit,
        ),
    )(x2d, scale2d)

    return out2d.reshape(orig_shape)


def _reference(x, weight, eps, add_unit_offset=True):
    xf = x.astype(jnp.float32)
    out = xf * lax.rsqrt(jnp.mean(xf * xf, axis=-1, keepdims=True) + eps)
    w = weight.astype(jnp.float32)
    out = out * ((1.0 + w) if add_unit_offset else w)
    return out.astype(x.dtype)


if __name__ == "__main__":
    key = jax.random.PRNGKey(0)
    kx, kw, kx2 = jax.random.split(key, 3)

    eps = 1e-6

    # Case 1: bf16 input, lane-dense hidden=128 (exercises f32 compute +
    # cast-back / type_as path and the 16-row sublane packing).
    batch, seq, hidden = 2, 8, 128
    x = jax.random.normal(kx, (batch, seq, hidden), dtype=jnp.float32).astype(jnp.bfloat16)
    # nn.Parameter(torch.zeros(dim)) -> zeros; perturb so (1 + w) is tested.
    weight = jnp.zeros((hidden,), dtype=jnp.float32) + 0.1 * jax.random.normal(
        kw, (hidden,), dtype=jnp.float32)

    out = jax.block_until_ready(rms_norm(x, weight, eps=eps, add_unit_offset=True))
    ref = _reference(x, weight, eps, add_unit_offset=True)
    assert out.shape == x.shape and out.dtype == x.dtype
    assert jnp.allclose(out.astype(jnp.float32), ref.astype(jnp.float32),
                        atol=1e-2, rtol=1e-2)

    # Case 2: f32 input (sublane multiple of 8), hidden=256.
    x2 = jax.random.normal(kx2, (4, 6, 256), dtype=jnp.float32)
    w2 = 0.05 * jax.random.normal(kw, (256,), dtype=jnp.float32)
    out2 = jax.block_until_ready(rms_norm(x2, w2, eps=eps, add_unit_offset=True))
    ref2 = _reference(x2, w2, eps, add_unit_offset=True)
    assert out2.shape == x2.shape and out2.dtype == x2.dtype
    assert jnp.allclose(out2, ref2, atol=1e-5, rtol=1e-5)

    print("KERNEL_OK")
</pallas_src>

<mosaic_0001>
module attributes {stable_mosaic.version = 11 : i64} {
  func.func @_rmsnorm_kernel(%arg0: i32, %arg1: memref<16x128xbf16, #tpu.memory_space<vmem>>, %arg2: memref<1x128xf32, #tpu.memory_space<vmem>>, %arg3: memref<16x128xbf16, #tpu.memory_space<vmem>>) attributes {dimension_semantics = [#tpu.dimension_semantics<parallel>], iteration_bounds = array<i64: 1>, scalar_prefetch = 0 : i64, scratch_operands = 0 : i64, tpu.core_type = #tpu.core_type<tc>, window_params = [{transform_indices = @transform_0, window_bounds = array<i64: 16, 128>}, {pipeline_mode = #tpu.pipeline_mode<synchronous>, transform_indices = @transform_1, window_bounds = array<i64: 1, 128>}, {transform_indices = @transform_2, window_bounds = array<i64: 16, 128>}]} {
    %c0 = arith.constant 0 : index
    %c0_0 = arith.constant 0 : index
    %0 = vector.load %arg1[%c0, %c0_0] : memref<16x128xbf16, #tpu.memory_space<vmem>>, vector<16x128xbf16>
    %1 = arith.extf %0 : vector<16x128xbf16> to vector<16x128xf32>
    %2 = arith.mulf %1, %1 : vector<16x128xf32>
    %cst = arith.constant dense<0.000000e+00> : vector<16xf32>
    %3 = vector.multi_reduction <add>, %2, %cst [1] : vector<16x128xf32> to vector<16xf32>
    %4 = vector.shape_cast %3 : vector<16xf32> to vector<16x1xf32>
    %cst_1 = arith.constant 1.280000e+02 : f32
    %5 = vector.broadcast %cst_1 : f32 to vector<16x1xf32>
    %6 = arith.divf %4, %5 : vector<16x1xf32>
    %cst_2 = arith.constant 9.99999997E-7 : f32
    %7 = vector.broadcast %cst_2 : f32 to vector<16x1xf32>
    %8 = arith.addf %6, %7 : vector<16x1xf32>
    %9 = math.rsqrt %8 : vector<16x1xf32>
    %c0_3 = arith.constant 0 : index
    %c0_4 = arith.constant 0 : index
    %10 = vector.load %arg2[%c0_3, %c0_4] : memref<1x128xf32, #tpu.memory_space<vmem>>, vector<1x128xf32>
    %c0_5 = arith.constant 0 : index
    %c0_6 = arith.constant 0 : index
    %11 = vector.load %arg1[%c0_5, %c0_6] : memref<16x128xbf16, #tpu.memory_space<vmem>>, vector<16x128xbf16>
    %12 = arith.extf %11 : vector<16x128xbf16> to vector<16x128xf32>
    %13 = vector.broadcast %9 : vector<16x1xf32> to vector<16x128xf32>
    %14 = arith.mulf %12, %13 : vector<16x128xf32>
    %15 = vector.broadcast %10 : vector<1x128xf32> to vector<16x128xf32>
    %16 = arith.mulf %14, %15 : vector<16x128xf32>
    %17 = arith.truncf %16 : vector<16x128xf32> to vector<16x128xbf16>
    %c0_7 = arith.constant 0 : index
    %c0_8 = arith.constant 0 : index
    %18 = vector.load %arg3[%c0_7, %c0_8] : memref<16x128xbf16, #tpu.memory_space<vmem>>, vector<16x128xbf16>
    tpu.vector_store %arg3[%c0_7, %c0_8], %17 {strides = array<i32>} : memref<16x128xbf16, #tpu.memory_space<vmem>>, vector<16x128xbf16>,
    return
  }
  func.func @transform_0(%arg0: i32) -> (i32, i32) {
    %c0_i32 = arith.constant 0 : i32
    %c0_i32_0 = arith.constant 0 : i32
    return %arg0, %c0_i32 : i32, i32
  }
  func.func @transform_1(%arg0: i32) -> (i32, i32) {
    %c0_i32 = arith.constant 0 : i32
    %c0_i32_0 = arith.constant 0 : i32
    %c0_i32_1 = arith.constant 0 : i32
    return %c0_i32, %c0_i32_0 : i32, i32
  }
  func.func @transform_2(%arg0: i32) -> (i32, i32) {
    %c0_i32 = arith.constant 0 : i32
    %c0_i32_0 = arith.constant 0 : i32
    return %arg0, %c0_i32 : i32, i32
  }
}

</mosaic_0001>

<llo_original>
// kernel: tpu_custom_call.1
$region0: #{tpu_custom_call.1}
  #allocation0 [shape = 'u32[]', space=smem, size = 0x4, offset = 0x4, fixed_abs, tag = 'smem constant byte address 0x4 - core index']
  #allocation1 [shape = 'u32[144,128]{1,0:T(1,128)}', space=vmem, size = 0x12000, scoped, tag = 'internal scratch']
  %s0 = inlined_call_operand.hbm [shape: bf16[16,128], index: 0, kind: input, shape index: {}]
  %s1 = inlined_call_operand.vmem [shape: f32[1,128], index: 1, kind: input, shape index: {}]
  %s2 = inlined_call_operand.hbm [shape: bf16[16,128], index: 2, kind: output, shape index: {}]
  %s3 = sld [smem:[#allocation0]]
  $region22: #{tpu_custom_call.1} parent=0
    _
  %s5 = ssub.s32 1, %s3
  %s6 = scalar_select 0, %s5, %s3
  $region1: #{tpu_custom_call.1} parent=0
    #allocation2 [shape = 'u8[4096]{0}', space=vmem, size = 0x1000, scoped, tag = 'input window, operand 0, single buffered']
    #allocation3 [shape = 's32[1]{0}', space=sflag, size = 0x4, scoped, tag = 'scoped memory for tpu_custom_call.1']
    #allocation4 [shape = 's32[1]{0}', space=sflag, size = 0x4, scoped, tag = 'scoped memory for tpu_custom_call.1']
    #allocation5 [shape = 'u8[4096]{0}', space=vmem, size = 0x1000, scoped, tag = 'output window, operand 0, single buffered']
    %7 = vsyncpa [#allocation3], 0
    %8 = vsyncpa [#allocation4], 0
    // Predicated region
    $region2: #{tpu_custom_call.1} parent=1 // pred_check
      _
    $region3: #{tpu_custom_call.1} parent=1 // pred_check_branch
      %10 = sbr.rel (0) target = $region5
    $region4: #{tpu_custom_call.1} parent=1 // pred_region
      %s12 = ssub.s32 128, 128
      %13 = vsyncadd [#allocation3], %s12
      %s14 = sshll.u32 [#allocation2], 4
      %s15 = int_to_ptr.vmem [resolvable:$true] %s14
      %20 = dma.hbm_to_vmem [thread:$0]  %s0, 128, %s15, [#allocation3], 64, 64, 4
    $region5: #{tpu_custom_call.1} parent=1 // pred_fallthru
      _
    // Predicated region
    $region6: #{tpu_custom_call.1} parent=1 // pred_check
      _
    $region7: #{tpu_custom_call.1} parent=1 // pred_check_branch
      %22 = sbr.rel (0) target = $region9
    $region8: #{tpu_custom_call.1} parent=1 // pred_region
      _
    $region9: #{tpu_custom_call.1} parent=1 // pred_fallthru
      _
    // Predicated region
    $region10: #{tpu_custom_call.1} parent=1 // pred_check
      _
    $region11: #{tpu_custom_call.1} parent=1 // pred_check_branch
      %24 = sbr.rel (0) target = $region13
    $region12: #{tpu_custom_call.1} parent=1 // pred_region
      %25 = dma.done [#allocation3], 128
    $region13: #{tpu_custom_call.1} parent=1 // pred_fallthru
      _
    %v26 = vld [vmem:[#allocation2] sm:$0xf]
    %v27 = vld [vmem:[#allocation2 + $0x4] sm:$0xf]
    %v28 = vunpack.c.l.bf16 %v26
    %v29 = vunpack.c.l.bf16 %v27
    %v30 = vmul.f32 %v28, %v28
    %v31 = vmul.f32 %v29, %v29
    %32 = vadd.xlane.f32.xlu0 %v30
    %v33 = vpop.xlane.xlu0 %32
    %34 = vadd.xlane.f32.xlu0 %v31
    %v35 = vpop.xlane.xlu0 %34
    %v36 = vrcp.pop 128.0
    %v37 = vmul.f32 %v33, %v36
    %v38 = vmul.f32 %v35, %v36
    %v39 = vadd.f32 %v37, 1e-06
    %v40 = vadd.f32 %v38, 1e-06
    %v41 = vrsqrt.pop %v39
    %v42 = vrsqrt.pop %v40
    %v43 = vld [vmem:[%s1] sm:$0x1]
    %v44 = vmul.f32 %v28, %v41
    %v45 = vmul.f32 %v29, %v42
    %v47 = vlaneseq
    %v48 = vshrl.u32 %v47, 7
    %v49 = vsub.s32 0, %v48
    %v50 = vrot.slane %v43, %v49
    %v52 = vmul.f32 %v44, %v50
    %v53 = vmul.f32 %v45, %v50
    %v54 = vpack.c.bf16 %v53, %v52
    %v56 = vunpack.c.l.b16 %v54
    %v57 = vunpack.c.h.b16 %v54
    %v58 = vpack.c.b16 %v56, %v56
    %v59 = vpack.c.b16 %v57, %v57
    %62 = vst [vmem:[#allocation5] sm:$0xf] %v58
    %63 = vst [vmem:[#allocation5 + $0x4] sm:$0xf] %v59
    // Predicated region
    $region14: #{tpu_custom_call.1} parent=1 // pred_check
      _
    $region15: #{tpu_custom_call.1} parent=1 // pred_check_branch
      %65 = sbr.rel (0) target = $region17
    $region16: #{tpu_custom_call.1} parent=1 // pred_region
      %s67 = ssub.s32 128, 128
      %68 = vsyncadd [#allocation4], %s67
      %s69 = sshll.u32 [#allocation5], 4
      %s70 = int_to_ptr.vmem [resolvable:$true] %s69
      %75 = dma.vmem_to_hbm [thread:$0]  %s70, 128, %s2, [#allocation4], 64, 64, 4
    $region17: #{tpu_custom_call.1} parent=1 // pred_fallthru
      _
    // Predicated region
    $region18: #{tpu_custom_call.1} parent=1 // pred_check
      _
    $region19: #{tpu_custom_call.1} parent=1 // pred_check_branch
      %77 = sbr.rel (0) target = $region21
    $region20: #{tpu_custom_call.1} parent=1 // pred_region
      %78 = dma.done [#allocation4], 128
    $region21: #{tpu_custom_call.1} parent=1 // pred_fallthru
      _
    %79 = vsyncpa [#allocation3], 1
    %80 = vsyncpa [#allocation4], 1

</llo_original>
